<compile_context>
chip_gen: v7x
topology: tpu7x:2x2x1
jax: 0.10.0
libtpu: 0.0.40
codegen_flags: <defaults>
</compile_context>

<pallas_src>
import functools

import jax
import jax.numpy as jnp
from jax.experimental import pallas as pl
from jax.experimental.pallas import tpu as pltpu

MOMENTUM = 0.1  # PyTorch default in the module


def _round_down_128(v):
    return max(128, (int(v) // 128) * 128)


def _vmem_budgets():
    """(vmem_limit_bytes, tile_budget_bytes) sized per TPU generation."""
    try:
        info = pltpu.get_tpu_info()
        cap = int(getattr(info, "vmem_capacity_bytes", 128 * 1024 * 1024))
    except Exception:  # no TPU info available -> conservative default
        cap = 128 * 1024 * 1024
    if cap <= 96 * 1024 * 1024:
        # v7x-class: 64 MiB per TensorCore — stay well clear of physical.
        limit = 48 * 1024 * 1024
    else:
        # v5e / v6e: 128 MiB physical (default scoped limit is far smaller).
        limit = 100 * 1024 * 1024
    return limit, int(limit * 0.8)  # ~20% headroom for pipeline/body temporaries


def _per_lane_vmem_bytes(B, dtype_bytes):
    # Per feature lane: double-buffered x + out blocks, double-buffered
    # run/new_run rows, plus f32 body temporaries (working copy, s+x, inv, y).
    return 2 * 2 * B * dtype_bytes + 4 * B * 4 + 16


def _choose_tile_f(B, F, dtype_bytes, tile_budget):
    """Largest lane-dense feature tile that (a) fits the VMEM budget,
    (b) leaves >= 2 grid steps when F >= 256 (v7x megacore), and
    (c) prefers >= 4 grid steps while x blocks stay >= ~1 MiB (HBM roofline)."""
    if F <= 128:
        return F  # a block equal to the full dim is always legal
    f128 = _round_down_128(F)
    per_lane = _per_lane_vmem_bytes(B, dtype_bytes)
    tile = min(_round_down_128(tile_budget // per_lane), f128)
    # lanes needed so one x block reaches ~1 MiB of DMA
    roofline_lanes = _round_down_128((1 << 20) // max(1, B * dtype_bytes))
    quarter = _round_down_128(F // 4)
    half = _round_down_128(F // 2)
    if quarter >= roofline_lanes:
        tile = min(tile, quarter)  # >= 4 steps, blocks still >= ~1 MiB
    elif F >= 256:
        tile = min(tile, half)     # guarantee >= 2 steps so both v7x TCs work
    return int(max(128, tile))


def _bn_iadj_train_kernel(c_ref, x_ref, run_ref, out_ref, new_run_ref, *, momentum):
    # c_ref: (1,) f32 in SMEM, c == 0.5 * B / a with a = ang_inc+1 if ang_inc>0 else 1
    # x_ref: (B, TILE_F) | run_ref/new_run_ref: (1, TILE_F) | out_ref: (B, TILE_F)
    x = x_ref[...].astype(jnp.float32)
    b = x.shape[0]
    c = c_ref[0]

    s = jnp.sum(x, axis=0, keepdims=True)          # (1, TILE_F) batch sum (XLU)
    t = s + x                                      # "lack sum"
    # EUP reciprocal seed (free bundle slot) + one Newton step (2 VPU ops):
    # relative error ~1e-8, well inside the 1e-5 parity budget vs exact divide.
    inv = pl.reciprocal(t, approx=True)
    inv = inv * (2.0 - t * inv)
    y = c * inv                                    # == (0.5 / ((s+x)/B)) / a

    moving = jnp.sum(y, axis=0, keepdims=True) * (1.0 / b)   # (1, TILE_F)
    new_run_ref[...] = momentum * run_ref[...] + (1.0 - momentum) * moving
    out_ref[...] = (y * x).astype(out_ref.dtype)


def _reference_train(x, running, ang_inc, momentum=MOMENTUM):
    """Pure-JAX transcription of the PyTorch forward (training=True)."""
    xt = x.T                                             # (F, B)
    x_sum = jnp.sum(xt, axis=-1, keepdims=True)          # (F, 1)
    x_mean = (x_sum + xt) / xt.shape[-1]
    a = jnp.where(jnp.asarray(ang_inc) > 0, 1.0, 0.0) * ang_inc + 1.0
    y = (0.5 / x_mean) / a
    x_moving_rot = jnp.sum(y, axis=-1) / xt.shape[-1]    # (F,)
    new_run = momentum * running + (1.0 - momentum) * x_moving_rot
    return (y * xt).T, new_run


def qf_fb_bn_iadj(x, x_running_rot, ang_inc, training=True,
                  momentum=MOMENTUM, tile_f=None):
    """Forward of QF_FB_BN_IAdj.

    x: (B, F), x_running_rot: (F,), ang_inc: scalar.
    Returns (out (B, F), new_running_rot (F,)).
    In inference mode the running stat is returned unchanged.
    """
    B, F = x.shape
    run2d = x_running_rot.reshape(1, F).astype(jnp.float32)

    if not training:
        # Pure broadcast multiply: XLA already hits the HBM roofline and can fuse
        # this with neighbouring ops; a Pallas call would only add launch overhead.
        return x * run2d.astype(x.dtype), x_running_rot

    dtype_bytes = jnp.dtype(x.dtype).itemsize
    vmem_limit, tile_budget = _vmem_budgets()

    # Hoisted scalar path: c = 0.5 * B / a, a = ang_inc + 1 if ang_inc > 0 else 1.
    ang = jnp.asarray(ang_inc, jnp.float32)
    a = jnp.where(ang > 0, ang + 1.0, 1.0)
    c = ((0.5 * B) / a).reshape(1)

    if _per_lane_vmem_bytes(B, dtype_bytes) * 128 > tile_budget:
        # TODO(synk): very-large-batch path should be a two-pass streaming kernel
        # (pass 1 accumulates per-feature batch sums over B-chunks, pass 2 streams
        # B-chunks computing y / out / the moving mean); plain-JAX fallback for now.
        return _reference_train(x, x_running_rot, ang_inc, momentum)

    if tile_f is None:
        tile_f = _choose_tile_f(B, F, dtype_bytes, tile_budget)
    n_tiles = (F + tile_f - 1) // tile_f

    cparams = pltpu.CompilerParams(
        dimension_semantics=("parallel",),   # feature tiles are fully independent
        vmem_limit_bytes=vmem_limit,
    )

    kernel = functools.partial(_bn_iadj_train_kernel, momentum=float(momentum))
    out, new_run = pl.pallas_call(
        kernel,
        out_shape=(
            jax.ShapeDtypeStruct((B, F), x.dtype),
            jax.ShapeDtypeStruct((1, F), jnp.float32),
        ),
        grid=(n_tiles,),
        in_specs=[
            pl.BlockSpec(memory_space=pltpu.MemorySpace.SMEM),   # c: hoisted scalar
            pl.BlockSpec((B, tile_f), lambda j: (0, j)),         # x
            pl.BlockSpec((1, tile_f), lambda j: (0, j)),         # running_rot
        ],
        out_specs=(
            pl.BlockSpec((B, tile_f), lambda j: (0, j)),         # out
            pl.BlockSpec((1, tile_f), lambda j: (0, j)),         # new running_rot
        ),
        compiler_params=cparams,
    )(c, x, run2d)
    return out, new_run.reshape(F)


if __name__ == "__main__":
    key = jax.random.PRNGKey(0)

    # ----- small shape consistent with the module (batch=8, num_features=32) -----
    B, F = 8, 32
    # deterministic, strictly positive inputs (avoids 0.5 / 0 — the PyTorch
    # reference has no zero-guard either)
    x = jax.random.uniform(key, (B, F), dtype=jnp.float32, minval=0.1, maxval=1.0)

    # module __init__: x_running_rot = zeros(num_features), ang_inc = 1.0
    x_running_rot = jnp.zeros((F,), dtype=jnp.float32)
    ang_inc = jnp.float32(1.0)

    # training-mode forward (the interesting path)
    out, new_run = qf_fb_bn_iadj(x, x_running_rot, ang_inc, training=True)
    out = jax.block_until_ready(out)
    new_run = jax.block_until_ready(new_run)

    ref_out, ref_run = _reference_train(x, x_running_rot, ang_inc)
    assert jnp.allclose(out, ref_out, rtol=1e-5, atol=1e-5)
    assert jnp.allclose(new_run, ref_run, rtol=1e-5, atol=1e-5)

    # inference-mode forward (plain broadcast multiply, uses the updated stat)
    out_inf, _ = qf_fb_bn_iadj(x, new_run, ang_inc, training=False)
    out_inf = jax.block_until_ready(out_inf)
    assert jnp.allclose(out_inf, new_run[None, :] * x, rtol=1e-5, atol=1e-5)

    # ----- exercise the multi-tile (pipelined / 2-TensorCore) path -----
    B2, F2 = 8, 256
    x2 = jax.random.uniform(jax.random.PRNGKey(0), (B2, F2), dtype=jnp.float32,
                            minval=0.1, maxval=1.0)
    run2 = jnp.zeros((F2,), dtype=jnp.float32)
    out2, new_run2 = qf_fb_bn_iadj(x2, run2, ang_inc, training=True)
    out2 = jax.block_until_ready(out2)
    new_run2 = jax.block_until_ready(new_run2)
    ref_out2, ref_run2 = _reference_train(x2, run2, ang_inc)
    assert jnp.allclose(out2, ref_out2, rtol=1e-5, atol=1e-5)
    assert jnp.allclose(new_run2, ref_run2, rtol=1e-5, atol=1e-5)

    print("KERNEL_OK")
</pallas_src>

<mosaic_0001>
module attributes {stable_mosaic.version = 11 : i64} {
  func.func @_bn_iadj_train_kernel(%arg0: i32, %arg1: memref<1xf32, #tpu.memory_space<smem>>, %arg2: memref<8x32xf32, #tpu.memory_space<vmem>>, %arg3: memref<1x32xf32, #tpu.memory_space<vmem>>, %arg4: memref<8x32xf32, #tpu.memory_space<vmem>>, %arg5: memref<1x32xf32, #tpu.memory_space<vmem>>) attributes {dimension_semantics = [#tpu.dimension_semantics<parallel>], iteration_bounds = array<i64: 1>, scalar_prefetch = 0 : i64, scratch_operands = 0 : i64, tpu.core_type = #tpu.core_type<tc>, window_params = [{transform_indices = @transform_0, window_bounds = array<i64: 1>}, {transform_indices = @transform_1, window_bounds = array<i64: 8, 32>}, {transform_indices = @transform_2, window_bounds = array<i64: 1, 32>}, {transform_indices = @transform_3, window_bounds = array<i64: 8, 32>}, {transform_indices = @transform_4, window_bounds = array<i64: 1, 32>}]} {
    %c0 = arith.constant 0 : index
    %c0_0 = arith.constant 0 : index
    %0 = vector.load %arg2[%c0, %c0_0] : memref<8x32xf32, #tpu.memory_space<vmem>>, vector<8x32xf32>
    %c0_1 = arith.constant 0 : index
    %1 = memref.load %arg1[%c0_1] : memref<1xf32, #tpu.memory_space<smem>>
    %cst = arith.constant dense<0.000000e+00> : vector<32xf32>
    %2 = vector.multi_reduction <add>, %0, %cst [0] : vector<8x32xf32> to vector<32xf32>
    %3 = vector.shape_cast %2 : vector<32xf32> to vector<1x32xf32>
    %4 = vector.broadcast %3 : vector<1x32xf32> to vector<8x32xf32>
    %5 = arith.addf %4, %0 : vector<8x32xf32>
    %6 = tpu.reciprocal %5 {approx = true} : vector<8x32xf32> -> vector<8x32xf32>
    %7 = arith.mulf %5, %6 : vector<8x32xf32>
    %cst_2 = arith.constant 2.000000e+00 : f32
    %8 = vector.broadcast %cst_2 : f32 to vector<8x32xf32>
    %9 = arith.subf %8, %7 : vector<8x32xf32>
    %10 = arith.mulf %6, %9 : vector<8x32xf32>
    %11 = vector.broadcast %1 : f32 to vector<8x32xf32>
    %12 = arith.mulf %11, %10 : vector<8x32xf32>
    %cst_3 = arith.constant dense<0.000000e+00> : vector<32xf32>
    %13 = vector.multi_reduction <add>, %12, %cst_3 [0] : vector<8x32xf32> to vector<32xf32>
    %14 = vector.shape_cast %13 : vector<32xf32> to vector<1x32xf32>
    %cst_4 = arith.constant 1.250000e-01 : f32
    %15 = vector.broadcast %cst_4 : f32 to vector<1x32xf32>
    %16 = arith.mulf %14, %15 : vector<1x32xf32>
    %c0_5 = arith.constant 0 : index
    %c0_6 = arith.constant 0 : index
    %17 = vector.load %arg3[%c0_5, %c0_6] : memref<1x32xf32, #tpu.memory_space<vmem>>, vector<1x32xf32>
    %cst_7 = arith.constant 1.000000e-01 : f32
    %18 = vector.broadcast %cst_7 : f32 to vector<1x32xf32>
    %19 = arith.mulf %18, %17 : vector<1x32xf32>
    %cst_8 = arith.constant 0.899999976 : f32
    %20 = vector.broadcast %cst_8 : f32 to vector<1x32xf32>
    %21 = arith.mulf %20, %16 : vector<1x32xf32>
    %22 = arith.addf %19, %21 : vector<1x32xf32>
    %c0_9 = arith.constant 0 : index
    %c0_10 = arith.constant 0 : index
    %23 = vector.load %arg5[%c0_9, %c0_10] : memref<1x32xf32, #tpu.memory_space<vmem>>, vector<1x32xf32>
    tpu.vector_store %arg5[%c0_9, %c0_10], %22 {strides = array<i32>} : memref<1x32xf32, #tpu.memory_space<vmem>>, vector<1x32xf32>,
    %24 = arith.mulf %12, %0 : vector<8x32xf32>
    %c0_11 = arith.constant 0 : index
    %c0_12 = arith.constant 0 : index
    %25 = vector.load %arg4[%c0_11, %c0_12] : memref<8x32xf32, #tpu.memory_space<vmem>>, vector<8x32xf32>
    tpu.vector_store %arg4[%c0_11, %c0_12], %24 {strides = array<i32>} : memref<8x32xf32, #tpu.memory_space<vmem>>, vector<8x32xf32>,
    return
  }
  func.func @transform_0(%arg0: i32) -> i32 {
    %c0_i32 = arith.constant 0 : i32
    %c0_i32_0 = arith.constant 0 : i32
    return %c0_i32 : i32
  }
  func.func @transform_1(%arg0: i32) -> (i32, i32) {
    %c0_i32 = arith.constant 0 : i32
    %c0_i32_0 = arith.constant 0 : i32
    return %c0_i32, %arg0 : i32, i32
  }
  func.func @transform_2(%arg0: i32) -> (i32, i32) {
    %c0_i32 = arith.constant 0 : i32
    %c0_i32_0 = arith.constant 0 : i32
    return %c0_i32, %arg0 : i32, i32
  }
  func.func @transform_3(%arg0: i32) -> (i32, i32) {
    %c0_i32 = arith.constant 0 : i32
    %c0_i32_0 = arith.constant 0 : i32
    return %c0_i32, %arg0 : i32, i32
  }
  func.func @transform_4(%arg0: i32) -> (i32, i32) {
    %c0_i32 = arith.constant 0 : i32
    %c0_i32_0 = arith.constant 0 : i32
    return %c0_i32, %arg0 : i32, i32
  }
}

</mosaic_0001>

<llo_original>
// kernel: tpu_custom_call.1
$region0: #{tpu_custom_call.1}
  #allocation0 [shape = 'u32[]', space=smem, size = 0x4, offset = 0x4, fixed_abs, tag = 'smem constant byte address 0x4 - core index']
  #allocation1 [shape = 'u32[144,128]{1,0:T(1,128)}', space=vmem, size = 0x12000, scoped, tag = 'internal scratch']
  #allocation2 [shape = 'f32[1]{0:T(128)S(6)}', space=smem, size = 0x200, scoped, tag = 'scoped memory for tpu_custom_call.1']
  %s0 = inlined_call_operand.<no memory space> [shape: f32[1], index: 0, kind: input, shape index: {}]
  %s1 = inlined_call_operand.hbm [shape: f32[8,32], index: 1, kind: input, shape index: {}]
  %s2 = inlined_call_operand.hbm [shape: f32[1,32], index: 2, kind: input, shape index: {}]
  %s3 = inlined_call_operand.hbm [shape: f32[8,32], index: 3, kind: output, shape index: {0}]
  %s4 = inlined_call_operand.hbm [shape: f32[1,32], index: 4, kind: output, shape index: {1}]
  %5 = xla_tuple %s3, %s4
  %s6 = sld [smem:[#allocation0]]
  $region38: #{tpu_custom_call.1} parent=0
    _
  %s8 = ssub.s32 1, %s6
  %s9 = scalar_select 0, %s8, %s6
  %10 = sst [smem:[#allocation2]] %s0
  $region1: #{tpu_custom_call.1} parent=0
    #allocation3 [shape = 'u8[4096]{0}', space=vmem, size = 0x1000, scoped, tag = 'input window, operand 1, single buffered']
    #allocation4 [shape = 's32[1]{0}', space=sflag, size = 0x4, scoped, tag = 'scoped memory for tpu_custom_call.1']
    #allocation5 [shape = 's32[1]{0}', space=sflag, size = 0x4, scoped, tag = 'scoped memory for tpu_custom_call.1']
    #allocation6 [shape = 'u8[512]{0}', space=vmem, size = 0x400, scoped, tag = 'input window, operand 2, single buffered']
    #allocation7 [shape = 's32[1]{0}', space=sflag, size = 0x4, scoped, tag = 'scoped memory for tpu_custom_call.1']
    #allocation8 [shape = 'u8[4096]{0}', space=vmem, size = 0x1000, scoped, tag = 'output window, operand 0, single buffered']
    #allocation9 [shape = 'u8[512]{0}', space=vmem, size = 0x400, scoped, tag = 'output window, operand 1, single buffered']
    #allocation10 [shape = 's32[1]{0}', space=sflag, size = 0x4, scoped, tag = 'scoped memory for tpu_custom_call.1']
    %11 = vsyncpa [#allocation4], 0
    %12 = vsyncpa [#allocation7], 0
    %13 = vsyncpa [#allocation5], 0
    %14 = vsyncpa [#allocation10], 0
    // Predicated region
    $region2: #{tpu_custom_call.1} parent=1 // pred_check
      _
    $region3: #{tpu_custom_call.1} parent=1 // pred_check_branch
      %16 = sbr.rel (0) target = $region5
    $region4: #{tpu_custom_call.1} parent=1 // pred_region
      _
    $region5: #{tpu_custom_call.1} parent=1 // pred_fallthru
      _
    // Predicated region
    $region6: #{tpu_custom_call.1} parent=1 // pred_check
      _
    $region7: #{tpu_custom_call.1} parent=1 // pred_check_branch
      %18 = sbr.rel (0) target = $region9
    $region8: #{tpu_custom_call.1} parent=1 // pred_region
      %s20 = ssub.s32 128, 128
      %21 = vsyncadd [#allocation4], %s20
      %s23 = sshll.u32 [#allocation3], 4
      %s24 = int_to_ptr.vmem [resolvable:$true] %s23
      %26 = dma.hbm_to_vmem [thread:$0]  %s1, 128, %s24, [#allocation4]
    $region9: #{tpu_custom_call.1} parent=1 // pred_fallthru
      _
    // Predicated region
    $region10: #{tpu_custom_call.1} parent=1 // pred_check
      _
    $region11: #{tpu_custom_call.1} parent=1 // pred_check_branch
      %28 = sbr.rel (0) target = $region13
    $region12: #{tpu_custom_call.1} parent=1 // pred_region
      %s30 = ssub.s32 16, 16
      %31 = vsyncadd [#allocation7], %s30
      %s33 = sshll.u32 [#allocation6], 4
      %s34 = int_to_ptr.vmem [resolvable:$true] %s33
      %36 = dma.hbm_to_vmem [thread:$0]  %s2, 16, %s34, [#allocation7]
    $region13: #{tpu_custom_call.1} parent=1 // pred_fallthru
      _
    // Predicated region
    $region14: #{tpu_custom_call.1} parent=1 // pred_check
      _
    $region15: #{tpu_custom_call.1} parent=1 // pred_check_branch
      %38 = sbr.rel (0) target = $region17
    $region16: #{tpu_custom_call.1} parent=1 // pred_region
      %39 = dma.done [#allocation4], 128
    $region17: #{tpu_custom_call.1} parent=1 // pred_fallthru
      _
    // Predicated region
    $region18: #{tpu_custom_call.1} parent=1 // pred_check
      _
    $region19: #{tpu_custom_call.1} parent=1 // pred_check_branch
      %41 = sbr.rel (0) target = $region21
    $region20: #{tpu_custom_call.1} parent=1 // pred_region
      %42 = dma.done [#allocation7], 16
    $region21: #{tpu_custom_call.1} parent=1 // pred_fallthru
      _
    %v43 = vld [vmem:[#allocation3] sm:$0xff]
    %s44 = sld [smem:[#allocation2]]
    %vm45 = vcmask 261120
    %v46 = vsel %vm45, %v43, 0.0
    %v47 = vrot.slane %v46, 4
    %v48 = vadd.f32 %v46, %v47
    %v49 = vrot.slane %v48, 2
    %v50 = vadd.f32 %v48, %v49
    %v51 = vrot.slane %v50, 1
    %v52 = vadd.f32 %v50, %v51
    %v53 = vadd.f32 %v52, %v43
    %v54 = vrcp.pop %v53
    %v55 = vmul.f32 %v53, %v54
    %v56 = vsub.f32 2.0, %v55
    %v57 = vmul.f32 %v54, %v56
    %v58 = vstv %s44
    %v59 = vmul.f32 %v58, %v57
    %v60 = vsel %vm45, %v59, 0.0
    %v61 = vrot.slane %v60, 4
    %v62 = vadd.f32 %v60, %v61
    %v63 = vrot.slane %v62, 2
    %v64 = vadd.f32 %v62, %v63
    %v65 = vrot.slane %v64, 1
    %v66 = vadd.f32 %v64, %v65
    %v67 = vmul.f32 %v66, 0.125
    %v68 = vld [vmem:[#allocation6] sm:$0x1]
    %v69 = vmul.f32 %v68, 0.1
    %v70 = vmul.f32 %v67, 0.9
    %v71 = vadd.f32 %v69, %v70
    %vm72 = vcmask 253952
    %73 = vst.msk [vmem:[#allocation9] sm:$0x1] %vm72, %v71
    %v74 = vmul.f32 %v59, %v43
    %75 = vst.msk [vmem:[#allocation8] sm:$0xff] %vm45, %v74
    // Predicated region
    $region22: #{tpu_custom_call.1} parent=1 // pred_check
      _
    $region23: #{tpu_custom_call.1} parent=1 // pred_check_branch
      %77 = sbr.rel (0) target = $region25
    $region24: #{tpu_custom_call.1} parent=1 // pred_region
      %s79 = ssub.s32 128, 128
      %80 = vsyncadd [#allocation5], %s79
      %s82 = sshll.u32 [#allocation8], 4
      %s83 = int_to_ptr.vmem [resolvable:$true] %s82
      %85 = dma.vmem_to_hbm [thread:$0]  %s83, 128, %s3, [#allocation5]
    $region25: #{tpu_custom_call.1} parent=1 // pred_fallthru
      _
    // Predicated region
    $region26: #{tpu_custom_call.1} parent=1 // pred_check
      _
    $region27: #{tpu_custom_call.1} parent=1 // pred_check_branch
      %87 = sbr.rel (0) target = $region29
    $region28: #{tpu_custom_call.1} parent=1 // pred_region
      %s89 = ssub.s32 16, 16
      %90 = vsyncadd [#allocation10], %s89
      %s92 = sshll.u32 [#allocation9], 4
      %s93 = int_to_ptr.vmem [resolvable:$true] %s92
      %95 = dma.vmem_to_hbm [thread:$0]  %s93, 16, %s4, [#allocation10]
    $region29: #{tpu_custom_call.1} parent=1 // pred_fallthru
      _
    // Predicated region
    $region30: #{tpu_custom_call.1} parent=1 // pred_check
      _
    $region31: #{tpu_custom_call.1} parent=1 // pred_check_branch
      %97 = sbr.rel (0) target = $region33
    $region32: #{tpu_custom_call.1} parent=1 // pred_region
      %98 = dma.done [#allocation5], 128
    $region33: #{tpu_custom_call.1} parent=1 // pred_fallthru
      _
    // Predicated region
    $region34: #{tpu_custom_call.1} parent=1 // pred_check
      _
    $region35: #{tpu_custom_call.1} parent=1 // pred_check_branch
      %100 = sbr.rel (0) target = $region37
    $region36: #{tpu_custom_call.1} parent=1 // pred_region
      %101 = dma.done [#allocation10], 16
    $region37: #{tpu_custom_call.1} parent=1 // pred_fallthru
      _
    %102 = vsyncpa [#allocation4], 1
    %103 = vsyncpa [#allocation7], 1
    %104 = vsyncpa [#allocation5], 1
    %105 = vsyncpa [#allocation10], 1

</llo_original>
